<compile_context>
chip_gen: v7x
topology: tpu7x:2x2x1
jax: 0.10.0
libtpu: 0.0.40
codegen_flags: <defaults>
</compile_context>

<pallas_src>
import jax
import jax.numpy as jnp
from jax.experimental import pallas as pl
from jax.experimental.pallas import tpu as pltpu

_LANE = 128
_TARGET_TILE_BYTES = 2 * 1024 * 1024   # ~2 MiB DMA tiles (1-4 MiB sweet spot)


def _round_up(a, m):
    return ((a + m - 1) // m) * m


def _pool_sum_kernel(x_ref, sum_ref):
    # x_ref: (1, C, T_HW)    sum_ref: (1, C, 1) f32 accumulator (resident over t)
    @pl.when(pl.program_id(1) == 0)
    def _():
        sum_ref[...] = jnp.zeros_like(sum_ref)
    sum_ref[...] += jnp.sum(x_ref[...].astype(jnp.float32), axis=-1, keepdims=True)


def _scale_kernel(x_ref, y_ref, o_ref):
    # x_ref/o_ref: (1, C, T_HW)    y_ref: (1, C, 1) f32 per-channel attention
    x = x_ref[...].astype(jnp.float32)
    o_ref[...] = (x * y_ref[...]).astype(o_ref.dtype)


def channel_attention(x, w1, b1, w2, b2):
    """x: (N, C, H, W).  w1: (C//r, C), b1: (C//r,), w2: (C, C//r), b2: (C,)."""
    N, C, H, W = x.shape
    HW = H * W
    x_flat = x.reshape(N, C, HW)

    # ---- tiling: lane-dense, multiple-of-128 spatial tiles of ~2 MiB -------
    bytes_per_col = C * x.dtype.itemsize
    hw_lane = _round_up(HW, _LANE)
    t_hw = max(_LANE, (_TARGET_TILE_BYTES // max(bytes_per_col, 1)) // _LANE * _LANE)
    t_hw = min(hw_lane, t_hw)
    hw_pad = _round_up(HW, t_hw)
    n_hw = hw_pad // t_hw

    if hw_pad != HW:
        x_flat = jnp.pad(x_flat, ((0, 0), (0, 0), (0, hw_pad - HW)))

    # ---- phase 1: per-channel spatial sums (Pallas accumulator kernel) -----
    sums = pl.pallas_call(
        _pool_sum_kernel,
        out_shape=jax.ShapeDtypeStruct((N, C, 1), jnp.float32),
        grid_spec=pltpu.PrefetchScalarGridSpec(
            num_scalar_prefetch=0,
            grid=(N, n_hw),
            in_specs=[pl.BlockSpec((1, C, t_hw), lambda n, t: (n, 0, t))],
            out_specs=pl.BlockSpec((1, C, 1), lambda n, t: (n, 0, 0)),
        ),
        compiler_params=pltpu.CompilerParams(
            dimension_semantics=("parallel", "arbitrary")),
    )(x_flat)

    # ---- phase 2: tiny channel MLP in XLA (lane-dense (N, C) matmuls) ------
    pooled = sums[:, :, 0] * (1.0 / HW)                              # (N, C)
    h = jnp.maximum(pooled @ w1.astype(jnp.float32).T + b1, 0.0)     # (N, Cr)
    y = jax.nn.sigmoid(h @ w2.astype(jnp.float32).T + b2)            # (N, C)
    y3 = y.astype(jnp.float32)[:, :, None]                           # (N, C, 1)

    # ---- phase 3: streaming broadcast-scale kernel (2-D parallel grid) -----
    out_flat = pl.pallas_call(
        _scale_kernel,
        out_shape=jax.ShapeDtypeStruct((N, C, hw_pad), x.dtype),
        grid_spec=pltpu.PrefetchScalarGridSpec(
            num_scalar_prefetch=0,
            grid=(N, n_hw),
            in_specs=[
                pl.BlockSpec((1, C, t_hw), lambda n, t: (n, 0, t)),
                pl.BlockSpec((1, C, 1), lambda n, t: (n, 0, 0)),
            ],
            out_specs=pl.BlockSpec((1, C, t_hw), lambda n, t: (n, 0, t)),
        ),
        compiler_params=pltpu.CompilerParams(
            dimension_semantics=("parallel", "parallel")),
    )(x_flat, y3)

    if hw_pad != HW:
        out_flat = out_flat[:, :, :HW]
    return out_flat.reshape(N, C, H, W)


def _reference(x, w1, b1, w2, b2):
    pooled = jnp.mean(x.astype(jnp.float32), axis=(2, 3))   # (N, C)
    h = jnp.maximum(pooled @ w1.T + b1, 0.0)                # (N, Cr)
    y = jax.nn.sigmoid(h @ w2.T + b2)                       # (N, C)
    return (x * y[:, :, None, None]).astype(x.dtype)


def _run_case(key, N, C, H, W, reduction):
    Cr = max(C // reduction, 1)
    kx, kw1, kb1, kw2, kb2 = jax.random.split(key, 5)
    x = jax.random.normal(kx, (N, C, H, W), dtype=jnp.float32)
    # Synthetic parameters (Conv3d(k=1) weights, squeezed to 2-D / 1-D).
    w1 = jax.random.normal(kw1, (Cr, C), dtype=jnp.float32) * 0.1
    b1 = jax.random.normal(kb1, (Cr,), dtype=jnp.float32) * 0.1
    w2 = jax.random.normal(kw2, (C, Cr), dtype=jnp.float32) * 0.1
    b2 = jax.random.normal(kb2, (C,), dtype=jnp.float32) * 0.1

    out = channel_attention(x, w1, b1, w2, b2)
    out = jax.block_until_ready(out)
    ref = _reference(x, w1, b1, w2, b2)
    assert out.shape == x.shape and out.dtype == x.dtype
    assert jnp.allclose(out, ref, atol=1e-5, rtol=1e-5)


if __name__ == "__main__":
    key = jax.random.PRNGKey(0)
    k1, k2 = jax.random.split(key)
    # Case 1: HW already a multiple of 128 (lane-dense, no padding needed).
    _run_case(k1, N=2, C=32, H=16, W=16, reduction=16)
    # Case 2: HW = 49 -> exercises the zero-pad-to-128 lane-dense path.
    _run_case(k2, N=2, C=16, H=7, W=7, reduction=8)
    print("KERNEL_OK")
</pallas_src>

<mosaic_0001>
module attributes {stable_mosaic.version = 11 : i64} {
  func.func @_pool_sum_kernel(%arg0: i32, %arg1: i32, %arg2: memref<1x32x256xf32, #tpu.memory_space<vmem>>, %arg3: memref<1x32x1xf32, #tpu.memory_space<vmem>>) attributes {dimension_semantics = [#tpu.dimension_semantics<parallel>, #tpu.dimension_semantics<arbitrary>], iteration_bounds = array<i64: 2, 1>, scalar_prefetch = 0 : i64, scratch_operands = 0 : i64, tpu.core_type = #tpu.core_type<tc>, window_params = [{transform_indices = @transform_0, window_bounds = array<i64: 1, 32, 256>}, {transform_indices = @transform_1, window_bounds = array<i64: 1, 32, 1>}]} {
    %c0_i32 = arith.constant 0 : i32
    %0 = arith.cmpi eq, %arg1, %c0_i32 : i32
    %1 = arith.extui %0 : i1 to i32
    %c0_i32_0 = arith.constant 0 : i32
    %2 = arith.cmpi ne, %1, %c0_i32_0 : i32
    scf.if %2 {
      %cst_9 = arith.constant 0.000000e+00 : f32
      %9 = vector.broadcast %cst_9 : f32 to vector<1x32x1xf32>
      %c0_10 = arith.constant 0 : index
      %c0_11 = arith.constant 0 : index
      %c0_12 = arith.constant 0 : index
      %10 = vector.load %arg3[%c0_10, %c0_11, %c0_12] : memref<1x32x1xf32, #tpu.memory_space<vmem>>, vector<1x32x1xf32>
      tpu.vector_store %arg3[%c0_10, %c0_11, %c0_12], %9 {strides = array<i32>} : memref<1x32x1xf32, #tpu.memory_space<vmem>>, vector<1x32x1xf32>,
    } else {
    }
    %c0 = arith.constant 0 : index
    %c0_1 = arith.constant 0 : index
    %c0_2 = arith.constant 0 : index
    %3 = vector.load %arg3[%c0, %c0_1, %c0_2] : memref<1x32x1xf32, #tpu.memory_space<vmem>>, vector<1x32x1xf32>
    %c0_3 = arith.constant 0 : index
    %c0_4 = arith.constant 0 : index
    %c0_5 = arith.constant 0 : index
    %4 = vector.load %arg2[%c0_3, %c0_4, %c0_5] : memref<1x32x256xf32, #tpu.memory_space<vmem>>, vector<1x32x256xf32>
    %cst = arith.constant dense<0.000000e+00> : vector<1x32xf32>
    %5 = vector.multi_reduction <add>, %4, %cst [2] : vector<1x32x256xf32> to vector<1x32xf32>
    %6 = vector.shape_cast %5 : vector<1x32xf32> to vector<1x32x1xf32>
    %7 = arith.addf %3, %6 : vector<1x32x1xf32>
    %c0_6 = arith.constant 0 : index
    %c0_7 = arith.constant 0 : index
    %c0_8 = arith.constant 0 : index
    %8 = vector.load %arg3[%c0_6, %c0_7, %c0_8] : memref<1x32x1xf32, #tpu.memory_space<vmem>>, vector<1x32x1xf32>
    tpu.vector_store %arg3[%c0_6, %c0_7, %c0_8], %7 {strides = array<i32>} : memref<1x32x1xf32, #tpu.memory_space<vmem>>, vector<1x32x1xf32>,
    return
  }
  func.func @transform_0(%arg0: i32, %arg1: i32) -> (i32, i32, i32) {
    %c0_i32 = arith.constant 0 : i32
    %c0_i32_0 = arith.constant 0 : i32
    return %arg0, %c0_i32, %arg1 : i32, i32, i32
  }
  func.func @transform_1(%arg0: i32, %arg1: i32) -> (i32, i32, i32) {
    %c0_i32 = arith.constant 0 : i32
    %c0_i32_0 = arith.constant 0 : i32
    %c0_i32_1 = arith.constant 0 : i32
    return %arg0, %c0_i32, %c0_i32_0 : i32, i32, i32
  }
}

</mosaic_0001>

<llo_original>
// kernel: tpu_custom_call.1
$region0: #{tpu_custom_call.1}
  #allocation0 [shape = 'u32[]', space=smem, size = 0x4, offset = 0x4, fixed_abs, tag = 'smem constant byte address 0x4 - core index']
  #allocation1 [shape = 'u32[144,128]{1,0:T(1,128)}', space=vmem, size = 0x12000, scoped, tag = 'internal scratch']
  %s0 = inlined_call_operand.hbm [shape: f32[2,32,256], index: 0, kind: input, shape index: {}]
  %s1 = inlined_call_operand.vmem [shape: f32[2,32,1], index: 1, kind: output, shape index: {}]
  %s2 = sld [smem:[#allocation0]]
  $region45: #{tpu_custom_call.1} parent=0
    _
  %s4 = ssub.s32 1, %s2
  %s5 = scalar_select 0, %s4, %s2
  $region1: #{tpu_custom_call.1} parent=0
    #allocation2 [shape = 'u8[65536]{0}', space=vmem, size = 0x10000, scoped, tag = 'input window, operand 0']
    #allocation3 [shape = 's32[2]{0}', space=sflag, size = 0x8, scoped, tag = 'scoped memory for tpu_custom_call.1']
    %6 = vsyncpa [#allocation3], 0
    %s7 = scalar_lea.sflag [#allocation3], 1
    %8 = vsyncpa %s7, 0
    loop: start=0, step=1, limit=4
    $region2: #{tpu_custom_call.1} parent=1 // loop_pre_header
      _
    $region3: #{tpu_custom_call.1} parent=1 // loop_header
      %s10 = sphi 0, %s14
      %p11 = scmp.ge.s32.totalorder %s10, 4
      %s17 = sphi 0, %s29
      %s18 = sphi 0, %s25
      %s19 = sphi 0, %s17
      %s20 = sphi 0, %s18
      %s21 = sphi 0, %s19
      %s22 = sphi 0, %s20
      %s34 = sphi 0, %s36
      %s37 = sphi 0, %s34
      %s38 = sphi 0, %s37
      %s54 = sphi 0, %s38
      %s60 = sphi 0, %s62
      %s63 = sphi 0, %s60
      %s64 = sphi 0, %s63
      %s80 = sphi 0, %s64
    $region4: #{tpu_custom_call.1} parent=1 // loop_header_branch
      %13 = sbr.rel (%p11) target = $region8
    $region5: #{tpu_custom_call.1} parent=1 // loop_body
      %s15 = ssub.s32 %s10, 1
      %s16 = ssub.s32 %s10, 2
      %s23 = sadd.s32 1, %s18
      %p24 = scmp.ge.s32.totalorder %s23, 1
      %s25 = scalar_select %p24, 0, %s23
      %s26 = sadd.s32 1, %s17
      %s27 = scalar_select %p24, %s26, %s17
      %p28 = scmp.ge.s32.totalorder %s27, 2
      %s29 = scalar_select %p28, 0, %s27
      %s30 = ssub.s32 %s17, %s29
      %s31 = ssub.s32 %s18, %s25
      %s32 = sor.u32 %s30, %s31
      %p33 = scmp.eq.s32.totalorder %s32, 0
      %s35 = sadd.s32 %s34, 1
      %s36 = scalar_select %p33, %s34, %s35
      %p39 = pneg %p33
      %p40 = scmp.eq.s32.totalorder %s10, 1
      %p41 = por %p39, %p40
      %p42 = scmp.ne.s32.totalorder %s34, %s37
      %p43 = scmp.eq.s32.totalorder %s10, 0
      %p44 = por %p42, %p43
      %p45 = scmp.ne.s32.totalorder %s34, %s37
      %p46 = scmp.eq.s32.totalorder %s15, 1
      %p47 = por %p45, %p46
      %p48 = scmp.ne.s32.totalorder %s37, %s38
      %p49 = scmp.eq.s32.totalorder %s15, 0
      %p50 = por %p48, %p49
      %p51 = scmp.ne.s32.totalorder %s37, %s38
      %p52 = scmp.eq.s32.totalorder %s16, 1
      %p53 = por %p51, %p52
      %p55 = scmp.ne.s32.totalorder %s38, %s54
      %p56 = scmp.eq.s32.totalorder %s16, 0
      %p57 = por %p55, %p56
      %s58 = ssub.s32 %s17, %s29
      %p59 = scmp.eq.s32.totalorder %s58, 0
      %s61 = sadd.s32 %s60, 1
      %s62 = scalar_select %p59, %s60, %s61
      %p65 = pneg %p59
      %p66 = scmp.eq.s32.totalorder %s10, 1
      %p67 = por %p65, %p66
      %p68 = scmp.ne.s32.totalorder %s60, %s63
      %p69 = scmp.eq.s32.totalorder %s10, 0
      %p70 = por %p68, %p69
      %p71 = scmp.ne.s32.totalorder %s60, %s63
      %p72 = scmp.eq.s32.totalorder %s15, 1
      %p73 = por %p71, %p72
      %p74 = scmp.ne.s32.totalorder %s63, %s64
      %p75 = scmp.eq.s32.totalorder %s15, 0
      %p76 = por %p74, %p75
      %p77 = scmp.ne.s32.totalorder %s63, %s64
      %p78 = scmp.eq.s32.totalorder %s16, 1
      %p79 = por %p77, %p78
      %p81 = scmp.ne.s32.totalorder %s64, %s80
      %p82 = scmp.eq.s32.totalorder %s16, 0
      %p83 = por %p81, %p82
      %p84 = scmp.le.s32.totalorder 1, %s10
      %p85 = scmp.lt.s32.totalorder %s10, 3
      %p86 = pnand %p84, %p85
      %p87 = pneg %p86
      // Predicated region
      $region9: #{tpu_custom_call.1} parent=5 // pred_check
        _
      $region10: #{tpu_custom_call.1} parent=5 // pred_check_branch
        %89 = sbr.rel (%p86) target = $region12
      $region11: #{tpu_custom_call.1} parent=5 // pred_region
        %s90 = ssub.s32 %s10, 1
      $region12: #{tpu_custom_call.1} parent=5 // pred_fallthru
        _
      %p91 = scmp.lt.s32.totalorder %s10, 2
      // Predicated region
      $region13: #{tpu_custom_call.1} parent=5 // pred_check
        %p92 = pneg %p91
      $region14: #{tpu_custom_call.1} parent=5 // pred_check_branch
        %94 = sbr.rel (%p92) target = $region16
      $region15: #{tpu_custom_call.1} parent=5 // pred_region
        // Predicated region
        $region17: #{tpu_custom_call.1} parent=15 // pred_check
          %p95 = pneg %p44
        $region18: #{tpu_custom_call.1} parent=15 // pred_check_branch
          %97 = sbr.rel (%p95) target = $region20
        $region19: #{tpu_custom_call.1} parent=15 // pred_region
          %s98 = sand.u32 %s34, 1
          %s99 = scalar_lea.sflag [#allocation3], %s98
          %s100 = sand.u32 %s34, 1
          %s101 = smul.addr %s100, 64
          %s102 = scalar_lea.vmem [#allocation2], %s101
          %s103 = smul.u32 2, %s18
          %s105 = ssub.s32 1024, 1024
          %106 = vsyncadd %s99, %s105
          %s107 = smul.addr %s17, 8
          %s108 = sadd.s32 %s103, %s107
          %s109 = smul.addr %s108, 128
          %s110 = scalar_lea.hbm %s0, %s109
          %s111 = sshll.u32 %s102, 4
          %s112 = int_to_ptr.vmem [resolvable:$true] %s111
          %117 = dma.hbm_to_vmem [thread:$0]  %s110, 1024, %s112, %s99, 256, 256, 16
        $region20: #{tpu_custom_call.1} parent=15 // pred_fallthru
          _
      $region16: #{tpu_custom_call.1} parent=5 // pred_fallthru
        _
      %p118 = scmp.le.s32.totalorder 1, %s10
      %p119 = scmp.lt.s32.totalorder %s10, 3
      %p120 = pnand %p118, %p119
      %p121 = pneg %p120
      // Predicated region
      $region21: #{tpu_custom_call.1} parent=5 // pred_check
        _
      $region22: #{tpu_custom_call.1} parent=5 // pred_check_branch
        %123 = sbr.rel (%p120) target = $region24
      $region23: #{tpu_custom_call.1} parent=5 // pred_region
        %s124 = ssub.s32 %s10, 1
        %s125 = sand.u32 %s37, 1
        %s126 = scalar_lea.sflag [#allocation3], %s125
        %s127 = sand.u32 %s37, 1
        %s128 = smul.addr %s127, 64
        %s129 = scalar_lea.vmem [#allocation2], %s128
        // Predicated region
        $region25: #{tpu_custom_call.1} parent=23 // pred_check
          %p130 = pneg %p50
        $region26: #{tpu_custom_call.1} parent=23 // pred_check_branch
          %132 = sbr.rel (%p130) target = $region28
        $region27: #{tpu_custom_call.1} parent=23 // pred_region
          %133 = dma.done %s126, 1024
        $region28: #{tpu_custom_call.1} parent=23 // pred_fallthru
          _
        %s134 = sand.u32 %s37, 1
        %s135 = scalar_lea.sflag [#allocation3], %s134
        %s136 = sand.u32 %s37, 1
        %s137 = smul.addr %s136, 64
        %s138 = scalar_lea.vmem [#allocation2], %s137
        %p139 = pneg %p50
        %p140 = pneg %p47
        %p141 = pneg %p76
        %p142 = pneg %p73
        %p143 = scmp.lt.s32.totalorder %s19, 1
        %s144 = scalar_select %p143, %s19, 1
        %s145 = smul.addr %s144, 4
        %s146 = smul.addr %s145, 8
        %s147 = scalar_lea.vmem %s1, %s146
        %s148 = smul.u32 2, %s20
        %p149 = scmp.lt.s32.totalorder %s19, 1
        %s150 = scalar_select %p149, %s19, 1
        %s151 = smul.addr %s150, 4
        %s152 = smul.addr %s151, 8
        %s153 = scalar_lea.vmem %s1, %s152
        %p154 = scmp.eq.s32.totalorder %s20, 0
        // Predicated region
        $region29: #{tpu_custom_call.1} parent=23 // pred_check
          %p155 = pneg %p154
        $region30: #{tpu_custom_call.1} parent=23 // pred_check_branch
          %157 = sbr.rel (%p155) target = $region32
        $region31: #{tpu_custom_call.1} parent=23 // pred_region
          %vm158 = vcmask 7168
          %159 = vst.msk [vmem:[%s153] sm:$0xff] %vm158, 0.0
          %160 = vst.msk [vmem:[%s153 + $0x8] sm:$0xff] %vm158, 0.0
          %161 = vst.msk [vmem:[%s153 + $0x10] sm:$0xff] %vm158, 0.0
          %162 = vst.msk [vmem:[%s153 + $0x18] sm:$0xff] %vm158, 0.0
        $region32: #{tpu_custom_call.1} parent=23 // pred_fallthru
          _
        %v163 = vld [vmem:[%s153] sm:$0xff]
        %v164 = vld [vmem:[%s153 + $0x8] sm:$0xff]
        %v165 = vld [vmem:[%s153 + $0x10] sm:$0xff]
        %v166 = vld [vmem:[%s153 + $0x18] sm:$0xff]
        %v167 = vld [vmem:[%s129] sm:$0xff]
        %v168 = vld [vmem:[%s129 + $0x8] sm:$0xff]
        %v169 = vld [vmem:[%s129 + $0x10] sm:$0xff]
        %v170 = vld [vmem:[%s129 + $0x18] sm:$0xff]
        %v171 = vld [vmem:[%s129 + $0x20] sm:$0xff]
        %v172 = vld [vmem:[%s129 + $0x28] sm:$0xff]
        %v173 = vld [vmem:[%s129 + $0x30] sm:$0xff]
        %v174 = vld [vmem:[%s129 + $0x38] sm:$0xff]
        %v175 = vadd.f32 %v167, %v168
        %176 = vadd.xlane.f32.xlu0 %v175
        %v177 = vpop.xlane.xlu0 %176
        %v178 = vadd.f32 %v169, %v170
        %179 = vadd.xlane.f32.xlu0 %v178
        %v180 = vpop.xlane.xlu0 %179
        %v181 = vadd.f32 %v171, %v172
        %182 = vadd.xlane.f32.xlu0 %v181
        %v183 = vpop.xlane.xlu0 %182
        %v184 = vadd.f32 %v173, %v174
        %185 = vadd.xlane.f32.xlu0 %v184
        %v186 = vpop.xlane.xlu0 %185
        %v187 = vadd.f32 %v163, %v177
        %v188 = vadd.f32 %v164, %v180
        %v189 = vadd.f32 %v165, %v183
        %v190 = vadd.f32 %v166, %v186
        %vm191 = vcmask 7168
        %192 = vst.msk [vmem:[%s153] sm:$0xff] %vm191, %v187
        %193 = vst.msk [vmem:[%s153 + $0x8] sm:$0xff] %vm191, %v188
        %194 = vst.msk [vmem:[%s153 + $0x10] sm:$0xff] %vm191, %v189
        %195 = vst.msk [vmem:[%s153 + $0x18] sm:$0xff] %vm191, %v190
        %p196 = scmp.lt.s32.totalorder %s19, 1
        %s197 = scalar_select %p196, %s19, 1
        %s198 = smul.addr %s197, 4
        %s199 = smul.addr %s198, 8
        %s200 = scalar_lea.vmem %s1, %s199
        // Predicated region
        $region33: #{tpu_custom_call.1} parent=23 // pred_check
          %p201 = pneg %p73
        $region34: #{tpu_custom_call.1} parent=23 // pred_check_branch
          %203 = sbr.rel (%p201) target = $region36
        $region35: #{tpu_custom_call.1} parent=23 // pred_region
          _
        $region36: #{tpu_custom_call.1} parent=23 // pred_fallthru
          _
      $region24: #{tpu_custom_call.1} parent=5 // pred_fallthru
        _
      %p204 = scmp.le.s32.totalorder 2, %s10
      // Predicated region
      $region37: #{tpu_custom_call.1} parent=5 // pred_check
        %p205 = pneg %p204
      $region38: #{tpu_custom_call.1} parent=5 // pred_check_branch
        %207 = sbr.rel (%p205) target = $region40
      $region39: #{tpu_custom_call.1} parent=5 // pred_region
        %s208 = ssub.s32 %s10, 2
        // Predicated region
        $region41: #{tpu_custom_call.1} parent=39 // pred_check
          %p209 = pneg %p79
        $region42: #{tpu_custom_call.1} parent=39 // pred_check_branch
          %211 = sbr.rel (%p209) target = $region44
        $region43: #{tpu_custom_call.1} parent=39 // pred_region
          %p212 = scmp.lt.s32.totalorder %s21, 1
          %s213 = scalar_select %p212, %s21, 1
          %s214 = smul.addr %s213, 4
          %s215 = smul.addr %s214, 8
          %s216 = scalar_lea.vmem %s1, %s215
        $region44: #{tpu_custom_call.1} parent=39 // pred_fallthru
          _
      $region40: #{tpu_custom_call.1} parent=5 // pred_fallthru
        _
    $region6: #{tpu_custom_call.1} parent=1 // loop_footer
      %s14 = sadd.s32 1, %s10
    $region7: #{tpu_custom_call.1} parent=1 // loop_footer_branch
      %9 = sbr.rel target = $region3
    $region8: #{tpu_custom_call.1} parent=1 // loop_exit
      _
    %217 = vsyncpa [#allocation3], 1
    %s218 = scalar_lea.sflag [#allocation3], 1
    %219 = vsyncpa %s218, 1

</llo_original>
